<compile_context>
chip_gen: v7x
topology: tpu7x:2x2x1
jax: 0.10.0
libtpu: 0.0.40
codegen_flags: <defaults>
</compile_context>

<pallas_src>
import functools

import jax
import jax.numpy as jnp
from jax.experimental import pallas as pl
from jax.experimental.pallas import tpu as pltpu


def _ce_label_smooth_kernel(logits_ref, targets_ref, loss_ref, *,
                            epsilon: float, num_classes: int,
                            use_label_smoothing: bool):
    # logits_ref: (TN, C), targets_ref: (TN, 1) int32, loss_ref: (TN, 1) f32
    x = logits_ref[...].astype(jnp.float32)                       # (TN, C)
    t = targets_ref[...]                                          # (TN, 1)

    # Numerically stable log-sum-exp along the class axis.
    m = jnp.max(x, axis=1, keepdims=True)                         # (TN, 1)
    shifted = x - m                                               # (TN, C)
    lse = jnp.log(jnp.sum(jnp.exp(shifted), axis=1, keepdims=True))  # (TN, 1)

    # shifted[i, t_i] via iota-compare + masked row reduction (no one-hot tensor).
    class_ids = jax.lax.broadcasted_iota(jnp.int32, x.shape, 1)   # (TN, C)
    x_t = jnp.sum(jnp.where(class_ids == t, shifted, 0.0),
                  axis=1, keepdims=True)                          # (TN, 1)

    nll = lse - x_t                                               # (TN, 1)
    if use_label_smoothing:
        # sum_c(-log_probs) = C*lse - sum_c(shifted); weight eps/C.
        sum_shifted = jnp.sum(shifted, axis=1, keepdims=True)     # (TN, 1)
        smooth_term = (epsilon / num_classes) * (num_classes * lse - sum_shifted)
        loss = (1.0 - epsilon) * nll + smooth_term
    else:
        loss = nll
    loss_ref[...] = loss


def _pick_block_n(N: int, C: int, itemsize: int) -> int:
    # Target ~2 MiB per logits tile so (logits + targets + loss) x 2 buffers
    # fits comfortably in the scoped-VMEM default on every generation
    # (16 MiB on v5e, 32 MiB on v6e/v7x), while tiles stay large enough to
    # amortize the ~0.35 us per-grid-step overhead.
    target_bytes = 2 * 1024 * 1024
    rows = target_bytes // max(C * itemsize, 1)
    rows = max(8, min(1024, rows))
    rows = max(8, (rows // 8) * 8)        # f32/int32 sublane multiple
    if N <= rows:
        rows = N                          # single full-extent block (always legal)
    return int(rows)


def cross_entropy_label_smooth(logits, targets, *, num_classes,
                               epsilon=0.1, size_average=True,
                               use_label_smoothing=True, block_n=None):
    N, C = logits.shape
    assert C == num_classes
    targets2d = targets.reshape(N, 1).astype(jnp.int32)

    if block_n is None:
        block_n = _pick_block_n(N, C, jnp.dtype(logits.dtype).itemsize)

    kernel = functools.partial(
        _ce_label_smooth_kernel,
        epsilon=float(epsilon),
        num_classes=int(num_classes),
        use_label_smoothing=bool(use_label_smoothing),
    )

    grid = (pl.cdiv(N, block_n),)
    per_sample = pl.pallas_call(
        kernel,
        out_shape=jax.ShapeDtypeStruct((N, 1), jnp.float32),
        grid=grid,
        in_specs=[
            pl.BlockSpec((block_n, C), lambda i: (i, 0)),
            pl.BlockSpec((block_n, 1), lambda i: (i, 0)),
        ],
        out_specs=pl.BlockSpec((block_n, 1), lambda i: (i, 0)),
        compiler_params=pltpu.CompilerParams(
            dimension_semantics=("parallel",)),
    )(logits, targets2d)

    loss = per_sample[:, 0]                                       # (N,)
    if size_average:
        return jnp.mean(loss)
    return loss


def _reference(logits, targets, *, num_classes, epsilon=0.1,
               size_average=True, use_label_smoothing=True):
    log_probs = jax.nn.log_softmax(logits.astype(jnp.float32), axis=1)
    one_hot = jax.nn.one_hot(targets, num_classes, dtype=jnp.float32)
    if use_label_smoothing:
        one_hot = (1.0 - epsilon) * one_hot + epsilon / num_classes
    loss = jnp.sum(-one_hot * log_probs, axis=1)
    return jnp.mean(loss) if size_average else loss


if __name__ == "__main__":
    num_classes = 128
    batch = 32
    epsilon = 0.1

    key = jax.random.PRNGKey(0)
    k1, k2 = jax.random.split(key)
    logits = jax.random.normal(k1, (batch, num_classes), dtype=jnp.float32)
    targets = jax.random.randint(k2, (batch,), 0, num_classes, dtype=jnp.int32)

    # Force a multi-tile grid (grid=(4,)) so the pipelined path is exercised.
    out = cross_entropy_label_smooth(
        logits, targets, num_classes=num_classes, epsilon=epsilon,
        size_average=True, use_label_smoothing=True, block_n=8)
    out = jax.block_until_ready(out)
    ref = _reference(logits, targets, num_classes=num_classes, epsilon=epsilon,
                     size_average=True, use_label_smoothing=True)
    assert jnp.allclose(out, ref, atol=1e-5, rtol=1e-5), (out, ref)

    # size_average=False / no-smoothing path, auto block size (single tile).
    out_vec = jax.block_until_ready(cross_entropy_label_smooth(
        logits, targets, num_classes=num_classes, epsilon=epsilon,
        size_average=False, use_label_smoothing=False))
    ref_vec = _reference(logits, targets, num_classes=num_classes,
                         epsilon=epsilon, size_average=False,
                         use_label_smoothing=False)
    assert jnp.allclose(out_vec, ref_vec, atol=1e-5, rtol=1e-5)

    # bf16 logits stay bf16 through the DMA; upcast happens in-kernel.
    logits_bf16 = logits.astype(jnp.bfloat16)
    out_bf = jax.block_until_ready(cross_entropy_label_smooth(
        logits_bf16, targets, num_classes=num_classes, epsilon=epsilon,
        size_average=True, use_label_smoothing=True, block_n=16))
    ref_bf = _reference(logits_bf16, targets, num_classes=num_classes,
                        epsilon=epsilon, size_average=True,
                        use_label_smoothing=True)
    assert jnp.allclose(out_bf, ref_bf, atol=1e-4, rtol=1e-4), (out_bf, ref_bf)

    print("KERNEL_OK")
</pallas_src>

<mosaic_0001>
module attributes {stable_mosaic.version = 11 : i64} {
  func.func @_ce_label_smooth_kernel(%arg0: i32, %arg1: memref<8x128xf32, #tpu.memory_space<vmem>>, %arg2: memref<8x1xi32, #tpu.memory_space<vmem>>, %arg3: memref<8x1xf32, #tpu.memory_space<vmem>>) attributes {dimension_semantics = [#tpu.dimension_semantics<parallel>], iteration_bounds = array<i64: 4>, scalar_prefetch = 0 : i64, scratch_operands = 0 : i64, tpu.core_type = #tpu.core_type<tc>, window_params = [{transform_indices = @transform_0, window_bounds = array<i64: 8, 128>}, {transform_indices = @transform_1, window_bounds = array<i64: 8, 1>}, {transform_indices = @transform_2, window_bounds = array<i64: 8, 1>}]} {
    %c0 = arith.constant 0 : index
    %c0_0 = arith.constant 0 : index
    %0 = vector.load %arg1[%c0, %c0_0] : memref<8x128xf32, #tpu.memory_space<vmem>>, vector<8x128xf32>
    %c0_1 = arith.constant 0 : index
    %c0_2 = arith.constant 0 : index
    %1 = vector.load %arg2[%c0_1, %c0_2] : memref<8x1xi32, #tpu.memory_space<vmem>>, vector<8x1xi32>
    %cst = arith.constant dense<0xFF800000> : vector<8xf32>
    %2 = vector.multi_reduction <maximumf>, %0, %cst [1] : vector<8x128xf32> to vector<8xf32>
    %3 = vector.shape_cast %2 : vector<8xf32> to vector<8x1xf32>
    %4 = vector.broadcast %3 : vector<8x1xf32> to vector<8x128xf32>
    %5 = arith.subf %0, %4 : vector<8x128xf32>
    %6 = math.exp %5 : vector<8x128xf32>
    %cst_3 = arith.constant dense<0.000000e+00> : vector<8xf32>
    %7 = vector.multi_reduction <add>, %6, %cst_3 [1] : vector<8x128xf32> to vector<8xf32>
    %8 = vector.shape_cast %7 : vector<8xf32> to vector<8x1xf32>
    %9 = math.log %8 : vector<8x1xf32>
    %10 = tpu.iota {dimensions = array<i32: 1>} : vector<8x128xi32>
    %11 = vector.broadcast %1 : vector<8x1xi32> to vector<8x128xi32>
    %12 = arith.cmpi eq, %10, %11 : vector<8x128xi32>
    %cst_4 = arith.constant 0.000000e+00 : f32
    %13 = vector.broadcast %cst_4 : f32 to vector<8x128xf32>
    %14 = arith.select %12, %5, %13 : vector<8x128xi1>, vector<8x128xf32>
    %cst_5 = arith.constant dense<0.000000e+00> : vector<8xf32>
    %15 = vector.multi_reduction <add>, %14, %cst_5 [1] : vector<8x128xf32> to vector<8xf32>
    %16 = vector.shape_cast %15 : vector<8xf32> to vector<8x1xf32>
    %17 = arith.subf %9, %16 : vector<8x1xf32>
    %cst_6 = arith.constant dense<0.000000e+00> : vector<8xf32>
    %18 = vector.multi_reduction <add>, %5, %cst_6 [1] : vector<8x128xf32> to vector<8xf32>
    %19 = vector.shape_cast %18 : vector<8xf32> to vector<8x1xf32>
    %cst_7 = arith.constant 1.280000e+02 : f32
    %20 = vector.broadcast %cst_7 : f32 to vector<8x1xf32>
    %21 = arith.mulf %20, %9 : vector<8x1xf32>
    %22 = arith.subf %21, %19 : vector<8x1xf32>
    %cst_8 = arith.constant 7.812500e-04 : f32
    %23 = vector.broadcast %cst_8 : f32 to vector<8x1xf32>
    %24 = arith.mulf %23, %22 : vector<8x1xf32>
    %cst_9 = arith.constant 0.899999976 : f32
    %25 = vector.broadcast %cst_9 : f32 to vector<8x1xf32>
    %26 = arith.mulf %25, %17 : vector<8x1xf32>
    %27 = arith.addf %26, %24 : vector<8x1xf32>
    %c0_10 = arith.constant 0 : index
    %c0_11 = arith.constant 0 : index
    %28 = vector.load %arg3[%c0_10, %c0_11] : memref<8x1xf32, #tpu.memory_space<vmem>>, vector<8x1xf32>
    tpu.vector_store %arg3[%c0_10, %c0_11], %27 {strides = array<i32>} : memref<8x1xf32, #tpu.memory_space<vmem>>, vector<8x1xf32>,
    return
  }
  func.func @transform_0(%arg0: i32) -> (i32, i32) {
    %c0_i32 = arith.constant 0 : i32
    %c0_i32_0 = arith.constant 0 : i32
    return %arg0, %c0_i32 : i32, i32
  }
  func.func @transform_1(%arg0: i32) -> (i32, i32) {
    %c0_i32 = arith.constant 0 : i32
    %c0_i32_0 = arith.constant 0 : i32
    return %arg0, %c0_i32 : i32, i32
  }
  func.func @transform_2(%arg0: i32) -> (i32, i32) {
    %c0_i32 = arith.constant 0 : i32
    %c0_i32_0 = arith.constant 0 : i32
    return %arg0, %c0_i32 : i32, i32
  }
}

</mosaic_0001>

<llo_original>
// kernel: tpu_custom_call.1
$region0: #{tpu_custom_call.1}
  #allocation0 [shape = 'u32[]', space=smem, size = 0x4, offset = 0x4, fixed_abs, tag = 'smem constant byte address 0x4 - core index']
  #allocation1 [shape = 'u32[144,128]{1,0:T(1,128)}', space=vmem, size = 0x12000, scoped, tag = 'internal scratch']
  %s0 = inlined_call_operand.vmem [shape: f32[32,128], index: 0, kind: input, shape index: {}]
  %s1 = inlined_call_operand.vmem [shape: s32[32,1], index: 1, kind: input, shape index: {}]
  %s2 = inlined_call_operand.vmem [shape: f32[32,1], index: 2, kind: output, shape index: {}]
  %s3 = sld [smem:[#allocation0]]
  $region41: #{tpu_custom_call.1} parent=0
    _
  %s5 = ssub.s32 1, %s3
  %s6 = scalar_select 0, %s5, %s3
  loop: start=0, step=1, limit=6
  $region2: #{tpu_custom_call.1} parent=0 // loop_pre_header
    _
  $region3: #{tpu_custom_call.1} parent=0 // loop_header
    %s8 = sphi 0, %s12
    %p9 = scmp.ge.s32.totalorder %s8, 6
    %s18 = sphi 0, %s20
    %s21 = sphi 0, %s18
    %s22 = sphi 0, %s21
    %s38 = sphi 0, %s22
    %s44 = sphi 0, %s46
    %s47 = sphi 0, %s44
    %s48 = sphi 0, %s47
    %s64 = sphi 0, %s48
    %s70 = sphi 0, %s72
    %s73 = sphi 0, %s70
    %s74 = sphi 0, %s73
    %s90 = sphi 0, %s74
  $region4: #{tpu_custom_call.1} parent=0 // loop_header_branch
    %11 = sbr.rel (%p9) target = $region8
  $region5: #{tpu_custom_call.1} parent=0 // loop_body
    %s13 = ssub.s32 %s8, 1
    %s14 = ssub.s32 %s8, 2
    %s15 = sadd.s32 %s8, 1
    %s16 = ssub.s32 %s8, %s15
    %p17 = scmp.eq.s32.totalorder %s16, 0
    %s19 = sadd.s32 %s18, 1
    %s20 = scalar_select %p17, %s18, %s19
    %p23 = pneg %p17
    %p24 = scmp.eq.s32.totalorder %s8, 3
    %p25 = por %p23, %p24
    %p26 = scmp.ne.s32.totalorder %s18, %s21
    %p27 = scmp.eq.s32.totalorder %s8, 0
    %p28 = por %p26, %p27
    %p29 = scmp.ne.s32.totalorder %s18, %s21
    %p30 = scmp.eq.s32.totalorder %s13, 3
    %p31 = por %p29, %p30
    %p32 = scmp.ne.s32.totalorder %s21, %s22
    %p33 = scmp.eq.s32.totalorder %s13, 0
    %p34 = por %p32, %p33
    %p35 = scmp.ne.s32.totalorder %s21, %s22
    %p36 = scmp.eq.s32.totalorder %s14, 3
    %p37 = por %p35, %p36
    %p39 = scmp.ne.s32.totalorder %s22, %s38
    %p40 = scmp.eq.s32.totalorder %s14, 0
    %p41 = por %p39, %p40
    %s42 = ssub.s32 %s8, %s15
    %p43 = scmp.eq.s32.totalorder %s42, 0
    %s45 = sadd.s32 %s44, 1
    %s46 = scalar_select %p43, %s44, %s45
    %p49 = pneg %p43
    %p50 = scmp.eq.s32.totalorder %s8, 3
    %p51 = por %p49, %p50
    %p52 = scmp.ne.s32.totalorder %s44, %s47
    %p53 = scmp.eq.s32.totalorder %s8, 0
    %p54 = por %p52, %p53
    %p55 = scmp.ne.s32.totalorder %s44, %s47
    %p56 = scmp.eq.s32.totalorder %s13, 3
    %p57 = por %p55, %p56
    %p58 = scmp.ne.s32.totalorder %s47, %s48
    %p59 = scmp.eq.s32.totalorder %s13, 0
    %p60 = por %p58, %p59
    %p61 = scmp.ne.s32.totalorder %s47, %s48
    %p62 = scmp.eq.s32.totalorder %s14, 3
    %p63 = por %p61, %p62
    %p65 = scmp.ne.s32.totalorder %s48, %s64
    %p66 = scmp.eq.s32.totalorder %s14, 0
    %p67 = por %p65, %p66
    %s68 = ssub.s32 %s8, %s15
    %p69 = scmp.eq.s32.totalorder %s68, 0
    %s71 = sadd.s32 %s70, 1
    %s72 = scalar_select %p69, %s70, %s71
    %p75 = pneg %p69
    %p76 = scmp.eq.s32.totalorder %s8, 3
    %p77 = por %p75, %p76
    %p78 = scmp.ne.s32.totalorder %s70, %s73
    %p79 = scmp.eq.s32.totalorder %s8, 0
    %p80 = por %p78, %p79
    %p81 = scmp.ne.s32.totalorder %s70, %s73
    %p82 = scmp.eq.s32.totalorder %s13, 3
    %p83 = por %p81, %p82
    %p84 = scmp.ne.s32.totalorder %s73, %s74
    %p85 = scmp.eq.s32.totalorder %s13, 0
    %p86 = por %p84, %p85
    %p87 = scmp.ne.s32.totalorder %s73, %s74
    %p88 = scmp.eq.s32.totalorder %s14, 3
    %p89 = por %p87, %p88
    %p91 = scmp.ne.s32.totalorder %s74, %s90
    %p92 = scmp.eq.s32.totalorder %s14, 0
    %p93 = por %p91, %p92
    %p94 = scmp.le.s32.totalorder 1, %s8
    %p95 = scmp.lt.s32.totalorder %s8, 5
    %p96 = pnand %p94, %p95
    %p97 = pneg %p96
    // Predicated region
    $region9: #{tpu_custom_call.1} parent=5 // pred_check
      _
    $region10: #{tpu_custom_call.1} parent=5 // pred_check_branch
      %99 = sbr.rel (%p96) target = $region12
    $region11: #{tpu_custom_call.1} parent=5 // pred_region
      %s100 = ssub.s32 %s8, 1
    $region12: #{tpu_custom_call.1} parent=5 // pred_fallthru
      _
    %p101 = scmp.lt.s32.totalorder %s8, 4
    // Predicated region
    $region13: #{tpu_custom_call.1} parent=5 // pred_check
      %p102 = pneg %p101
    $region14: #{tpu_custom_call.1} parent=5 // pred_check_branch
      %104 = sbr.rel (%p102) target = $region16
    $region15: #{tpu_custom_call.1} parent=5 // pred_region
      // Predicated region
      $region17: #{tpu_custom_call.1} parent=15 // pred_check
        %p105 = pneg %p28
      $region18: #{tpu_custom_call.1} parent=15 // pred_check_branch
        %107 = sbr.rel (%p105) target = $region20
      $region19: #{tpu_custom_call.1} parent=15 // pred_region
        %p108 = scmp.lt.s32.totalorder %s8, 3
        %s109 = scalar_select %p108, %s8, 3
        %s110 = smul.addr %s109, 8
        %s111 = scalar_lea.vmem %s0, %s110
      $region20: #{tpu_custom_call.1} parent=15 // pred_fallthru
        _
      // Predicated region
      $region21: #{tpu_custom_call.1} parent=15 // pred_check
        %p112 = pneg %p54
      $region22: #{tpu_custom_call.1} parent=15 // pred_check_branch
        %114 = sbr.rel (%p112) target = $region24
      $region23: #{tpu_custom_call.1} parent=15 // pred_region
        %p115 = scmp.lt.s32.totalorder %s8, 3
        %s116 = scalar_select %p115, %s8, 3
        %s117 = smul.addr %s116, 8
        %s118 = scalar_lea.vmem %s1, %s117
      $region24: #{tpu_custom_call.1} parent=15 // pred_fallthru
        _
    $region16: #{tpu_custom_call.1} parent=5 // pred_fallthru
      _
    %p119 = scmp.le.s32.totalorder 1, %s8
    %p120 = scmp.lt.s32.totalorder %s8, 5
    %p121 = pnand %p119, %p120
    %p122 = pneg %p121
    // Predicated region
    $region25: #{tpu_custom_call.1} parent=5 // pred_check
      _
    $region26: #{tpu_custom_call.1} parent=5 // pred_check_branch
      %124 = sbr.rel (%p121) target = $region28
    $region27: #{tpu_custom_call.1} parent=5 // pred_region
      %s125 = ssub.s32 %s8, 1
      %p126 = scmp.lt.s32.totalorder %s13, 3
      %s127 = scalar_select %p126, %s13, 3
      %s128 = smul.addr %s127, 8
      %s129 = scalar_lea.vmem %s0, %s128
      %p130 = pneg %p34
      %p131 = pneg %p31
      %p132 = scmp.lt.s32.totalorder %s13, 3
      %s133 = scalar_select %p132, %s13, 3
      %s134 = smul.addr %s133, 8
      %s135 = scalar_lea.vmem %s1, %s134
      %p136 = pneg %p60
      %p137 = pneg %p57
      %p138 = pneg %p86
      %p139 = pneg %p83
      %p140 = scmp.lt.s32.totalorder %s13, 3
      %s141 = scalar_select %p140, %s13, 3
      %s142 = smul.addr %s141, 8
      %s143 = scalar_lea.vmem %s2, %s142
      %p144 = scmp.lt.s32.totalorder %s13, 3
      %s145 = scalar_select %p144, %s13, 3
      %s146 = smul.addr %s145, 8
      %s147 = scalar_lea.vmem %s0, %s146
      %p148 = scmp.lt.s32.totalorder %s13, 3
      %s149 = scalar_select %p148, %s13, 3
      %s150 = smul.addr %s149, 8
      %s151 = scalar_lea.vmem %s1, %s150
      %p152 = scmp.lt.s32.totalorder %s13, 3
      %s153 = scalar_select %p152, %s13, 3
      %s154 = smul.addr %s153, 8
      %s155 = scalar_lea.vmem %s2, %s154
      %v156 = vld [vmem:[%s147] sm:$0xff]
      %v157 = vld [vmem:[%s151] sm:$0xff]
      %158 = vmax.xlane.f32.xlu0 %v156
      %v159 = vpop.xlane.xlu0 %158
      %v160 = vsub.f32 %v156, %v159
      %v161 = vmul.f32 %v160, 1.442695
      %v162 = vpow.pop %v161
      %163 = vadd.xlane.f32.xlu0 %v162
      %v164 = vpop.xlane.xlu0 %163
      %v165 = vlog2.pop %v164
      %v166 = vmul.f32 %v165, 0.6931472
      %v167 = vlaneseq
      %v168 = vand.u32 %v167, 127
      %169 = vset.pattern.permute.xlu0 0
      %170 = vperm.xlu0 %169, %v157
      %v171 = vpop.permute.xlu0 %170
      %vm172 = vcmp.eq.s32.totalorder %v168, %v171
      %v173 = vsel %vm172, %v160, 0.0
      %174 = vadd.xlane.f32.xlu0 %v173
      %v175 = vpop.xlane.xlu0 %174
      %v176 = vsub.f32 %v166, %v175
      %177 = vadd.xlane.f32.xlu0 %v160
      %v178 = vpop.xlane.xlu0 %177
      %v179 = vmul.f32 %v166, 128.0
      %v180 = vsub.f32 %v179, %v178
      %v181 = vmul.f32 %v180, 0.00078125
      %v182 = vmul.f32 %v176, 0.9
      %v183 = vadd.f32 %v182, %v181
      %vm184 = vcmask 7168
      %185 = vst.msk [vmem:[%s155] sm:$0xff] %vm184, %v183
      %p186 = scmp.lt.s32.totalorder %s13, 3
      %s187 = scalar_select %p186, %s13, 3
      %s188 = smul.addr %s187, 8
      %s189 = scalar_lea.vmem %s2, %s188
      // Predicated region
      $region29: #{tpu_custom_call.1} parent=27 // pred_check
        %p190 = pneg %p83
      $region30: #{tpu_custom_call.1} parent=27 // pred_check_branch
        %192 = sbr.rel (%p190) target = $region32
      $region31: #{tpu_custom_call.1} parent=27 // pred_region
        _
      $region32: #{tpu_custom_call.1} parent=27 // pred_fallthru
        _
    $region28: #{tpu_custom_call.1} parent=5 // pred_fallthru
      _
    %p193 = scmp.le.s32.totalorder 2, %s8
    // Predicated region
    $region33: #{tpu_custom_call.1} parent=5 // pred_check
      %p194 = pneg %p193
    $region34: #{tpu_custom_call.1} parent=5 // pred_check_branch
      %196 = sbr.rel (%p194) target = $region36
    $region35: #{tpu_custom_call.1} parent=5 // pred_region
      %s197 = ssub.s32 %s8, 2
      // Predicated region
      $region37: #{tpu_custom_call.1} parent=35 // pred_check
        %p198 = pneg %p89
      $region38: #{tpu_custom_call.1} parent=35 // pred_check_branch
        %200 = sbr.rel (%p198) target = $region40
      $region39: #{tpu_custom_call.1} parent=35 // pred_region
        %p201 = scmp.lt.s32.totalorder %s14, 3
        %s202 = scalar_select %p201, %s14, 3
        %s203 = smul.addr %s202, 8
        %s204 = scalar_lea.vmem %s2, %s203
      $region40: #{tpu_custom_call.1} parent=35 // pred_fallthru
        _
    $region36: #{tpu_custom_call.1} parent=5 // pred_fallthru
      _
  $region6: #{tpu_custom_call.1} parent=0 // loop_footer
    %s12 = sadd.s32 1, %s8
  $region7: #{tpu_custom_call.1} parent=0 // loop_footer_branch
    %7 = sbr.rel target = $region3
  $region8: #{tpu_custom_call.1} parent=0 // loop_exit
    _

</llo_original>
